<compile_context>
chip_gen: v5e
topology: v5e:2x2
jax: 0.10.0
libtpu: 0.0.40
codegen_flags: <defaults>
</compile_context>

<pallas_src>
import jax
import jax.numpy as jnp
from jax.experimental import pallas as pl
from jax.experimental.pallas import tpu as pltpu

IGNORE_INDEX = 255
_UNROLL_C_MAX = 32          # unroll the class loop on the VPU when C is small
_LANE_TILE_CAP = 131072     # max lanes per block (multi-MiB blocks, per review)
_LANE_TILE_MIN = 1024       # keep each per-class DMA row >= 4 KiB for f32


def _round_up(x, m):
    return (x + m - 1) // m * m


def _vmem_limit_bytes():
    """Per-generation scoped-VMEM limit (v7x has only 64 MiB physical)."""
    try:
        cap = int(pltpu.get_tpu_info().vmem_capacity_bytes)
    except Exception:
        cap = 64 * 1024 * 1024  # conservative fallback (v7x per-TC VMEM)
    return int(min(cap * 3 // 4, 64 * 1024 * 1024))


def _choose_lane_tile(c, hw, itemsize, n_inputs, budget_bytes):
    """Pick the spatial (lane) tile so the per-step working set fits the budget."""
    hw_128 = max(128, _round_up(hw, 128))
    if c <= _UNROLL_C_MAX:
        tmp_bytes = 8 * 4            # a few (1, LT) f32 row temporaries per input
    else:
        tmp_bytes = 2 * c * 4        # full f32 upcast + exp temporary per input
    # double-buffered logits blocks + f32 temporaries + (tiny) uint8 targets
    bytes_per_lane = n_inputs * (2 * c * itemsize + tmp_bytes) + 2 * 1 + 4
    by_budget = max(128, (budget_bytes // bytes_per_lane) // 128 * 128)
    # TODO(synk): for very large C the _LANE_TILE_MIN floor can exceed the VMEM
    # budget; the proper fix is blocking over C with an online-softmax grid axis.
    return int(min(_LANE_TILE_CAP, hw_128, max(_LANE_TILE_MIN, by_budget)))


def _make_ce_kernel(n_inputs, c):
    """Kernel for one (image, lane-block) grid step, fused over n_inputs logits.

    refs layout: x_refs[0..K-1] (C, LT), t_ref (1, LT) uint8,
                 sum_refs[0..K-1] (1, 1) f32, cnt_ref (1, 1) f32
    """

    def kernel(*refs):
        x_refs = refs[:n_inputs]
        t_ref = refs[n_inputs]
        sum_refs = refs[n_inputs + 1:2 * n_inputs + 1]
        cnt_ref = refs[2 * n_inputs + 1]

        # uint8 targets widened once per block (255 == ignore / pad).
        t = t_ref[...].astype(jnp.int32)                    # (1, LT)
        valid = t != IGNORE_INDEX
        cnt_ref[...] = jnp.sum(valid.astype(jnp.float32), keepdims=True)

        for x_ref, s_ref in zip(x_refs, sum_refs):
            if c <= _UNROLL_C_MAX:
                # Unrolled over the small static class count: lane-dense VPU
                # max/select + EUP exp.  Rows are read from the ref one class at
                # a time so the full (C, LT) f32 upcast is never materialized.
                m = x_ref[0:1, :]
                for k in range(1, c):
                    m = jnp.maximum(m, x_ref[k:k + 1, :])
                m = m.astype(jnp.float32)
                ssum = jnp.zeros_like(m)
                picked = jnp.zeros_like(m)
                for k in range(c):
                    xk = x_ref[k:k + 1, :].astype(jnp.float32)
                    ssum = ssum + jnp.exp(xk - m)
                    picked = jnp.where(t == k, xk, picked)  # select, no extra add
            else:
                x = x_ref[...].astype(jnp.float32)
                m = jnp.max(x, axis=0, keepdims=True)
                ssum = jnp.sum(jnp.exp(x - m), axis=0, keepdims=True)
                row = jax.lax.broadcasted_iota(jnp.int32, x.shape, 0)
                picked = jnp.sum(jnp.where(row == t, x, 0.0),
                                 axis=0, keepdims=True)
            lse = m + jnp.log(ssum)                         # (1, LT)
            # Padded / stale lanes carry t == IGNORE_INDEX, so NaN/inf from
            # out-of-range logits never reaches the partial sum.
            loss = jnp.where(valid, lse - picked, 0.0)
            s_ref[...] = jnp.sum(loss, keepdims=True)

    return kernel


def _ce_mean_group(logits_list, target_nhw):
    """Per-input mean CE over non-ignored pixels for same-shape logit tensors."""
    n, c, h, w = logits_list[0].shape
    hw = h * w
    n_inputs = len(logits_list)
    itemsize = jnp.dtype(logits_list[0].dtype).itemsize
    vmem_limit = _vmem_limit_bytes()
    lane_tile = _choose_lane_tile(c, hw, itemsize, n_inputs, vmem_limit // 2)
    num_j = pl.cdiv(hw, lane_tile)
    hw_pad = num_j * lane_tile

    xs = [x.reshape(n, c, hw) for x in logits_list]  # free view of contiguous NCHW
    # Only the (tiny) target map is converted / padded; logits stream unpadded.
    t = target_nhw.reshape(n, 1, hw).astype(jnp.uint8)
    if hw_pad != hw:
        t = jnp.pad(t, ((0, 0), (0, 0), (0, hw_pad - hw)),
                    constant_values=IGNORE_INDEX)

    logit_spec = pl.BlockSpec((None, c, lane_tile), lambda ni, ji: (ni, 0, ji))
    tgt_spec = pl.BlockSpec((None, 1, lane_tile), lambda ni, ji: (ni, 0, ji))
    out_spec = pl.BlockSpec((None, None, 1, 1), lambda ni, ji: (ni, ji, 0, 0))
    out_shape = jax.ShapeDtypeStruct((n, num_j, 1, 1), jnp.float32)

    outs = pl.pallas_call(
        _make_ce_kernel(n_inputs, c),
        out_shape=tuple([out_shape] * (n_inputs + 1)),
        grid=(n, num_j),
        in_specs=[logit_spec] * n_inputs + [tgt_spec],
        out_specs=tuple([out_spec] * (n_inputs + 1)),
        compiler_params=pltpu.CompilerParams(
            dimension_semantics=("parallel", "parallel"),
            vmem_limit_bytes=vmem_limit),
    )(*xs, t)

    cnt = jnp.sum(outs[n_inputs])
    return [jnp.sum(s) / cnt for s in outs[:n_inputs]]


@jax.jit
def cross_entropy2d(inputs, target, scale_weight=None):
    """JAX/Pallas port of the PyTorch cross_entropy2d module forward.

    inputs: list/tuple of NCHW logit tensors (same target map for all)
    target: (N, H, W) int class-id map (255 == ignore)
    """
    if scale_weight is None:
        scale_weight = [0.4, 1.0]

    # Fuse same-shape heads into a single pallas_call (one target read, one
    # launch); different-shape heads get their own call.
    groups = {}
    for i, inp in enumerate(inputs):
        groups.setdefault((inp.shape, str(inp.dtype)), []).append(i)

    per_input_loss = [None] * len(inputs)
    for _, idxs in groups.items():
        group_losses = _ce_mean_group([inputs[i] for i in idxs], target)
        for i, li in zip(idxs, group_losses):
            per_input_loss[i] = li

    loss = 0.0
    for i, li in enumerate(per_input_loss):
        loss = loss + scale_weight[i] * li
    return loss


if __name__ == "__main__":
    key = jax.random.PRNGKey(0)
    k0, k1, k2, k3 = jax.random.split(key, 4)

    n, c, h, w = 2, 4, 16, 16
    logits0 = jax.random.normal(k0, (n, c, h, w), dtype=jnp.float32)
    logits1 = jax.random.normal(k1, (n, c, h, w), dtype=jnp.float32)
    target = jax.random.randint(k2, (n, h, w), 0, c, dtype=jnp.int32)
    # sprinkle some ignore_index pixels
    ignore_mask = jax.random.bernoulli(k3, 0.1, (n, h, w))
    target = jnp.where(ignore_mask, IGNORE_INDEX, target)

    loss = cross_entropy2d([logits0, logits1], target)
    loss = jax.block_until_ready(loss)

    # sanity check vs plain-JAX reference
    def ref_ce(logits, tgt):
        xx = jnp.transpose(logits, (0, 2, 3, 1)).reshape(-1, c)
        tt = tgt.reshape(-1)
        valid = tt != IGNORE_INDEX
        lse = jax.nn.logsumexp(xx, axis=1)
        picked = jnp.take_along_axis(
            xx, jnp.clip(tt, 0, c - 1)[:, None], axis=1)[:, 0]
        per = jnp.where(valid, lse - picked, 0.0)
        return jnp.sum(per) / jnp.sum(valid)

    ref = 0.4 * ref_ce(logits0, target) + 1.0 * ref_ce(logits1, target)
    assert jnp.allclose(loss, ref, rtol=1e-5, atol=1e-5), (loss, ref)

    print("KERNEL_OK")
</pallas_src>

<mosaic_0001>
module attributes {stable_mosaic.version = 11 : i64} {
  func.func @kernel(%arg0: i32, %arg1: i32, %arg2: memref<1x4x256xf32, #tpu.memory_space<vmem>>, %arg3: memref<1x4x256xf32, #tpu.memory_space<vmem>>, %arg4: memref<1x1x256xi8, #tpu.memory_space<vmem>>, %arg5: memref<1x1x1x1xf32, #tpu.memory_space<vmem>>, %arg6: memref<1x1x1x1xf32, #tpu.memory_space<vmem>>, %arg7: memref<1x1x1x1xf32, #tpu.memory_space<vmem>>) attributes {dimension_semantics = [#tpu.dimension_semantics<parallel>, #tpu.dimension_semantics<parallel>], iteration_bounds = array<i64: 2, 1>, scalar_prefetch = 0 : i64, scratch_operands = 0 : i64, tpu.core_type = #tpu.core_type<tc>, window_params = [{transform_indices = @transform_0, window_bounds = array<i64: 1, 4, 256>}, {transform_indices = @transform_1, window_bounds = array<i64: 1, 4, 256>}, {transform_indices = @transform_2, window_bounds = array<i64: 1, 1, 256>}, {transform_indices = @transform_3, window_bounds = array<i64: 1, 1, 1, 1>}, {transform_indices = @transform_4, window_bounds = array<i64: 1, 1, 1, 1>}, {transform_indices = @transform_5, window_bounds = array<i64: 1, 1, 1, 1>}]} {
    %c0 = arith.constant 0 : index
    %c0_0 = arith.constant 0 : index
    %c0_1 = arith.constant 0 : index
    %0 = vector.load %arg4[%c0, %c0_0, %c0_1] : memref<1x1x256xi8, #tpu.memory_space<vmem>>, vector<1x1x256xi8>
    %1 = vector.shape_cast %0 : vector<1x1x256xi8> to vector<1x256xi8>
    %2 = arith.extui %1 : vector<1x256xi8> to vector<1x256xi32>
    %c255_i32 = arith.constant 255 : i32
    %3 = vector.broadcast %c255_i32 : i32 to vector<1x256xi32>
    %4 = arith.cmpi ne, %2, %3 : vector<1x256xi32>
    %5 = arith.extui %4 : vector<1x256xi1> to vector<1x256xi32>
    %6 = arith.sitofp %5 : vector<1x256xi32> to vector<1x256xf32>
    %7 = vector.shape_cast %6 : vector<1x256xf32> to vector<1x1x256xf32>
    %cst = arith.constant dense<0.000000e+00> : vector<1xf32>
    %8 = vector.multi_reduction <add>, %7, %cst [1, 2] : vector<1x1x256xf32> to vector<1xf32>
    %9 = vector.shape_cast %8 : vector<1xf32> to vector<1x1x1xf32>
    %10 = vector.extract %9[0, 0, 0] : f32 from vector<1x1x1xf32>
    %11 = vector.broadcast %10 : f32 to vector<1x1xf32>
    %c0_2 = arith.constant 0 : index
    %c0_3 = arith.constant 0 : index
    %c0_4 = arith.constant 0 : index
    %c0_5 = arith.constant 0 : index
    %12 = vector.load %arg7[%c0_2, %c0_3, %c0_4, %c0_5] : memref<1x1x1x1xf32, #tpu.memory_space<vmem>>, vector<1x1x1x1xf32>
    %13 = vector.shape_cast %12 : vector<1x1x1x1xf32> to vector<1x1xf32>
    %14 = vector.shape_cast %11 : vector<1x1xf32> to vector<1x1x1x1xf32>
    tpu.vector_store %arg7[%c0_2, %c0_3, %c0_4, %c0_5], %14 {strides = array<i32>} : memref<1x1x1x1xf32, #tpu.memory_space<vmem>>, vector<1x1x1x1xf32>,
    %c0_6 = arith.constant 0 : index
    %c0_7 = arith.constant 0 : index
    %c0_8 = arith.constant 0 : index
    %15 = vector.load %arg2[%c0_6, %c0_7, %c0_8] : memref<1x4x256xf32, #tpu.memory_space<vmem>>, vector<1x1x256xf32>
    %16 = vector.shape_cast %15 : vector<1x1x256xf32> to vector<1x256xf32>
    %c0_9 = arith.constant 0 : index
    %c1 = arith.constant 1 : index
    %c0_10 = arith.constant 0 : index
    %17 = vector.load %arg2[%c0_9, %c1, %c0_10] : memref<1x4x256xf32, #tpu.memory_space<vmem>>, vector<1x1x256xf32>
    %18 = vector.shape_cast %17 : vector<1x1x256xf32> to vector<1x256xf32>
    %19 = arith.maximumf %16, %18 : vector<1x256xf32>
    %c0_11 = arith.constant 0 : index
    %c2 = arith.constant 2 : index
    %c0_12 = arith.constant 0 : index
    %20 = vector.load %arg2[%c0_11, %c2, %c0_12] : memref<1x4x256xf32, #tpu.memory_space<vmem>>, vector<1x1x256xf32>
    %21 = vector.shape_cast %20 : vector<1x1x256xf32> to vector<1x256xf32>
    %22 = arith.maximumf %19, %21 : vector<1x256xf32>
    %c0_13 = arith.constant 0 : index
    %c3 = arith.constant 3 : index
    %c0_14 = arith.constant 0 : index
    %23 = vector.load %arg2[%c0_13, %c3, %c0_14] : memref<1x4x256xf32, #tpu.memory_space<vmem>>, vector<1x1x256xf32>
    %24 = vector.shape_cast %23 : vector<1x1x256xf32> to vector<1x256xf32>
    %25 = arith.maximumf %22, %24 : vector<1x256xf32>
    %cst_15 = arith.constant 0.000000e+00 : f32
    %26 = vector.broadcast %cst_15 : f32 to vector<1x256xf32>
    %cst_16 = arith.constant 0.000000e+00 : f32
    %27 = vector.broadcast %cst_16 : f32 to vector<1x256xf32>
    %c0_17 = arith.constant 0 : index
    %c0_18 = arith.constant 0 : index
    %c0_19 = arith.constant 0 : index
    %28 = vector.load %arg2[%c0_17, %c0_18, %c0_19] : memref<1x4x256xf32, #tpu.memory_space<vmem>>, vector<1x1x256xf32>
    %29 = vector.shape_cast %28 : vector<1x1x256xf32> to vector<1x256xf32>
    %30 = arith.subf %29, %25 : vector<1x256xf32>
    %31 = math.exp %30 : vector<1x256xf32>
    %32 = arith.addf %26, %31 : vector<1x256xf32>
    %c0_i32 = arith.constant 0 : i32
    %33 = vector.broadcast %c0_i32 : i32 to vector<1x256xi32>
    %34 = arith.cmpi eq, %2, %33 : vector<1x256xi32>
    %35 = arith.select %34, %29, %27 : vector<1x256xi1>, vector<1x256xf32>
    %c0_20 = arith.constant 0 : index
    %c1_21 = arith.constant 1 : index
    %c0_22 = arith.constant 0 : index
    %36 = vector.load %arg2[%c0_20, %c1_21, %c0_22] : memref<1x4x256xf32, #tpu.memory_space<vmem>>, vector<1x1x256xf32>
    %37 = vector.shape_cast %36 : vector<1x1x256xf32> to vector<1x256xf32>
    %38 = arith.subf %37, %25 : vector<1x256xf32>
    %39 = math.exp %38 : vector<1x256xf32>
    %40 = arith.addf %32, %39 : vector<1x256xf32>
    %c1_i32 = arith.constant 1 : i32
    %41 = vector.broadcast %c1_i32 : i32 to vector<1x256xi32>
    %42 = arith.cmpi eq, %2, %41 : vector<1x256xi32>
    %43 = arith.select %42, %37, %35 : vector<1x256xi1>, vector<1x256xf32>
    %c0_23 = arith.constant 0 : index
    %c2_24 = arith.constant 2 : index
    %c0_25 = arith.constant 0 : index
    %44 = vector.load %arg2[%c0_23, %c2_24, %c0_25] : memref<1x4x256xf32, #tpu.memory_space<vmem>>, vector<1x1x256xf32>
    %45 = vector.shape_cast %44 : vector<1x1x256xf32> to vector<1x256xf32>
    %46 = arith.subf %45, %25 : vector<1x256xf32>
    %47 = math.exp %46 : vector<1x256xf32>
    %48 = arith.addf %40, %47 : vector<1x256xf32>
    %c2_i32 = arith.constant 2 : i32
    %49 = vector.broadcast %c2_i32 : i32 to vector<1x256xi32>
    %50 = arith.cmpi eq, %2, %49 : vector<1x256xi32>
    %51 = arith.select %50, %45, %43 : vector<1x256xi1>, vector<1x256xf32>
    %c0_26 = arith.constant 0 : index
    %c3_27 = arith.constant 3 : index
    %c0_28 = arith.constant 0 : index
    %52 = vector.load %arg2[%c0_26, %c3_27, %c0_28] : memref<1x4x256xf32, #tpu.memory_space<vmem>>, vector<1x1x256xf32>
    %53 = vector.shape_cast %52 : vector<1x1x256xf32> to vector<1x256xf32>
    %54 = arith.subf %53, %25 : vector<1x256xf32>
    %55 = math.exp %54 : vector<1x256xf32>
    %56 = arith.addf %48, %55 : vector<1x256xf32>
    %c3_i32 = arith.constant 3 : i32
    %57 = vector.broadcast %c3_i32 : i32 to vector<1x256xi32>
    %58 = arith.cmpi eq, %2, %57 : vector<1x256xi32>
    %59 = arith.select %58, %53, %51 : vector<1x256xi1>, vector<1x256xf32>
    %60 = math.log %56 : vector<1x256xf32>
    %61 = arith.addf %25, %60 : vector<1x256xf32>
    %62 = arith.subf %61, %59 : vector<1x256xf32>
    %cst_29 = arith.constant 0.000000e+00 : f32
    %63 = vector.broadcast %cst_29 : f32 to vector<1x256xf32>
    %64 = arith.select %4, %62, %63 : vector<1x256xi1>, vector<1x256xf32>
    %65 = vector.shape_cast %64 : vector<1x256xf32> to vector<1x1x256xf32>
    %cst_30 = arith.constant dense<0.000000e+00> : vector<1xf32>
    %66 = vector.multi_reduction <add>, %65, %cst_30 [1, 2] : vector<1x1x256xf32> to vector<1xf32>
    %67 = vector.shape_cast %66 : vector<1xf32> to vector<1x1x1xf32>
    %68 = vector.extract %67[0, 0, 0] : f32 from vector<1x1x1xf32>
    %69 = vector.broadcast %68 : f32 to vector<1x1xf32>
    %c0_31 = arith.constant 0 : index
    %c0_32 = arith.constant 0 : index
    %c0_33 = arith.constant 0 : index
    %c0_34 = arith.constant 0 : index
    %70 = vector.load %arg5[%c0_31, %c0_32, %c0_33, %c0_34] : memref<1x1x1x1xf32, #tpu.memory_space<vmem>>, vector<1x1x1x1xf32>
    %71 = vector.shape_cast %70 : vector<1x1x1x1xf32> to vector<1x1xf32>
    %72 = vector.shape_cast %69 : vector<1x1xf32> to vector<1x1x1x1xf32>
    tpu.vector_store %arg5[%c0_31, %c0_32, %c0_33, %c0_34], %72 {strides = array<i32>} : memref<1x1x1x1xf32, #tpu.memory_space<vmem>>, vector<1x1x1x1xf32>,
    %c0_35 = arith.constant 0 : index
    %c0_36 = arith.constant 0 : index
    %c0_37 = arith.constant 0 : index
    %73 = vector.load %arg3[%c0_35, %c0_36, %c0_37] : memref<1x4x256xf32, #tpu.memory_space<vmem>>, vector<1x1x256xf32>
    %74 = vector.shape_cast %73 : vector<1x1x256xf32> to vector<1x256xf32>
    %c0_38 = arith.constant 0 : index
    %c1_39 = arith.constant 1 : index
    %c0_40 = arith.constant 0 : index
    %75 = vector.load %arg3[%c0_38, %c1_39, %c0_40] : memref<1x4x256xf32, #tpu.memory_space<vmem>>, vector<1x1x256xf32>
    %76 = vector.shape_cast %75 : vector<1x1x256xf32> to vector<1x256xf32>
    %77 = arith.maximumf %74, %76 : vector<1x256xf32>
    %c0_41 = arith.constant 0 : index
    %c2_42 = arith.constant 2 : index
    %c0_43 = arith.constant 0 : index
    %78 = vector.load %arg3[%c0_41, %c2_42, %c0_43] : memref<1x4x256xf32, #tpu.memory_space<vmem>>, vector<1x1x256xf32>
    %79 = vector.shape_cast %78 : vector<1x1x256xf32> to vector<1x256xf32>
    %80 = arith.maximumf %77, %79 : vector<1x256xf32>
    %c0_44 = arith.constant 0 : index
    %c3_45 = arith.constant 3 : index
    %c0_46 = arith.constant 0 : index
    %81 = vector.load %arg3[%c0_44, %c3_45, %c0_46] : memref<1x4x256xf32, #tpu.memory_space<vmem>>, vector<1x1x256xf32>
    %82 = vector.shape_cast %81 : vector<1x1x256xf32> to vector<1x256xf32>
    %83 = arith.maximumf %80, %82 : vector<1x256xf32>
    %cst_47 = arith.constant 0.000000e+00 : f32
    %84 = vector.broadcast %cst_47 : f32 to vector<1x256xf32>
    %cst_48 = arith.constant 0.000000e+00 : f32
    %85 = vector.broadcast %cst_48 : f32 to vector<1x256xf32>
    %c0_49 = arith.constant 0 : index
    %c0_50 = arith.constant 0 : index
    %c0_51 = arith.constant 0 : index
    %86 = vector.load %arg3[%c0_49, %c0_50, %c0_51] : memref<1x4x256xf32, #tpu.memory_space<vmem>>, vector<1x1x256xf32>
    %87 = vector.shape_cast %86 : vector<1x1x256xf32> to vector<1x256xf32>
    %88 = arith.subf %87, %83 : vector<1x256xf32>
    %89 = math.exp %88 : vector<1x256xf32>
    %90 = arith.addf %84, %89 : vector<1x256xf32>
    %c0_i32_52 = arith.constant 0 : i32
    %91 = vector.broadcast %c0_i32_52 : i32 to vector<1x256xi32>
    %92 = arith.cmpi eq, %2, %91 : vector<1x256xi32>
    %93 = arith.select %92, %87, %85 : vector<1x256xi1>, vector<1x256xf32>
    %c0_53 = arith.constant 0 : index
    %c1_54 = arith.constant 1 : index
    %c0_55 = arith.constant 0 : index
    %94 = vector.load %arg3[%c0_53, %c1_54, %c0_55] : memref<1x4x256xf32, #tpu.memory_space<vmem>>, vector<1x1x256xf32>
    %95 = vector.shape_cast %94 : vector<1x1x256xf32> to vector<1x256xf32>
    %96 = arith.subf %95, %83 : vector<1x256xf32>
    %97 = math.exp %96 : vector<1x256xf32>
    %98 = arith.addf %90, %97 : vector<1x256xf32>
    %c1_i32_56 = arith.constant 1 : i32
    %99 = vector.broadcast %c1_i32_56 : i32 to vector<1x256xi32>
    %100 = arith.cmpi eq, %2, %99 : vector<1x256xi32>
    %101 = arith.select %100, %95, %93 : vector<1x256xi1>, vector<1x256xf32>
    %c0_57 = arith.constant 0 : index
    %c2_58 = arith.constant 2 : index
    %c0_59 = arith.constant 0 : index
    %102 = vector.load %arg3[%c0_57, %c2_58, %c0_59] : memref<1x4x256xf32, #tpu.memory_space<vmem>>, vector<1x1x256xf32>
    %103 = vector.shape_cast %102 : vector<1x1x256xf32> to vector<1x256xf32>
    %104 = arith.subf %103, %83 : vector<1x256xf32>
    %105 = math.exp %104 : vector<1x256xf32>
    %106 = arith.addf %98, %105 : vector<1x256xf32>
    %c2_i32_60 = arith.constant 2 : i32
    %107 = vector.broadcast %c2_i32_60 : i32 to vector<1x256xi32>
    %108 = arith.cmpi eq, %2, %107 : vector<1x256xi32>
    %109 = arith.select %108, %103, %101 : vector<1x256xi1>, vector<1x256xf32>
    %c0_61 = arith.constant 0 : index
    %c3_62 = arith.constant 3 : index
    %c0_63 = arith.constant 0 : index
    %110 = vector.load %arg3[%c0_61, %c3_62, %c0_63] : memref<1x4x256xf32, #tpu.memory_space<vmem>>, vector<1x1x256xf32>
    %111 = vector.shape_cast %110 : vector<1x1x256xf32> to vector<1x256xf32>
    %112 = arith.subf %111, %83 : vector<1x256xf32>
    %113 = math.exp %112 : vector<1x256xf32>
    %114 = arith.addf %106, %113 : vector<1x256xf32>
    %c3_i32_64 = arith.constant 3 : i32
    %115 = vector.broadcast %c3_i32_64 : i32 to vector<1x256xi32>
    %116 = arith.cmpi eq, %2, %115 : vector<1x256xi32>
    %117 = arith.select %116, %111, %109 : vector<1x256xi1>, vector<1x256xf32>
    %118 = math.log %114 : vector<1x256xf32>
    %119 = arith.addf %83, %118 : vector<1x256xf32>
    %120 = arith.subf %119, %117 : vector<1x256xf32>
    %cst_65 = arith.constant 0.000000e+00 : f32
    %121 = vector.broadcast %cst_65 : f32 to vector<1x256xf32>
    %122 = arith.select %4, %120, %121 : vector<1x256xi1>, vector<1x256xf32>
    %123 = vector.shape_cast %122 : vector<1x256xf32> to vector<1x1x256xf32>
    %cst_66 = arith.constant dense<0.000000e+00> : vector<1xf32>
    %124 = vector.multi_reduction <add>, %123, %cst_66 [1, 2] : vector<1x1x256xf32> to vector<1xf32>
    %125 = vector.shape_cast %124 : vector<1xf32> to vector<1x1x1xf32>
    %126 = vector.extract %125[0, 0, 0] : f32 from vector<1x1x1xf32>
    %127 = vector.broadcast %126 : f32 to vector<1x1xf32>
    %c0_67 = arith.constant 0 : index
    %c0_68 = arith.constant 0 : index
    %c0_69 = arith.constant 0 : index
    %c0_70 = arith.constant 0 : index
    %128 = vector.load %arg6[%c0_67, %c0_68, %c0_69, %c0_70] : memref<1x1x1x1xf32, #tpu.memory_space<vmem>>, vector<1x1x1x1xf32>
    %129 = vector.shape_cast %128 : vector<1x1x1x1xf32> to vector<1x1xf32>
    %130 = vector.shape_cast %127 : vector<1x1xf32> to vector<1x1x1x1xf32>
    tpu.vector_store %arg6[%c0_67, %c0_68, %c0_69, %c0_70], %130 {strides = array<i32>} : memref<1x1x1x1xf32, #tpu.memory_space<vmem>>, vector<1x1x1x1xf32>,
    return
  }
  func.func @transform_0(%arg0: i32, %arg1: i32) -> (i32, i32, i32) {
    %c0_i32 = arith.constant 0 : i32
    %c0_i32_0 = arith.constant 0 : i32
    return %arg0, %c0_i32, %arg1 : i32, i32, i32
  }
  func.func @transform_1(%arg0: i32, %arg1: i32) -> (i32, i32, i32) {
    %c0_i32 = arith.constant 0 : i32
    %c0_i32_0 = arith.constant 0 : i32
    return %arg0, %c0_i32, %arg1 : i32, i32, i32
  }
  func.func @transform_2(%arg0: i32, %arg1: i32) -> (i32, i32, i32) {
    %c0_i32 = arith.constant 0 : i32
    %c0_i32_0 = arith.constant 0 : i32
    return %arg0, %c0_i32, %arg1 : i32, i32, i32
  }
  func.func @transform_3(%arg0: i32, %arg1: i32) -> (i32, i32, i32, i32) {
    %c0_i32 = arith.constant 0 : i32
    %c0_i32_0 = arith.constant 0 : i32
    %c0_i32_1 = arith.constant 0 : i32
    return %arg0, %arg1, %c0_i32, %c0_i32_0 : i32, i32, i32, i32
  }
  func.func @transform_4(%arg0: i32, %arg1: i32) -> (i32, i32, i32, i32) {
    %c0_i32 = arith.constant 0 : i32
    %c0_i32_0 = arith.constant 0 : i32
    %c0_i32_1 = arith.constant 0 : i32
    return %arg0, %arg1, %c0_i32, %c0_i32_0 : i32, i32, i32, i32
  }
  func.func @transform_5(%arg0: i32, %arg1: i32) -> (i32, i32, i32, i32) {
    %c0_i32 = arith.constant 0 : i32
    %c0_i32_0 = arith.constant 0 : i32
    %c0_i32_1 = arith.constant 0 : i32
    return %arg0, %arg1, %c0_i32, %c0_i32_0 : i32, i32, i32, i32
  }
}

</mosaic_0001>

<llo_original>
// kernel: cross_entropy2d.1
$region0: #{cross_entropy2d.1}
  #allocation0 [shape = 'u32[]', space=smem, size = 0x4, offset = 0x4, fixed_abs, tag = 'smem constant byte address 0x4 - core index']
  #allocation1 [shape = 'u32[72,128]{1,0:T(1,128)}', space=vmem, size = 0x9000, scoped, tag = 'internal scratch']
  %s0 = inlined_call_operand.vmem [shape: f32[2,4,256], index: 0, kind: input, shape index: {}]
  %s1 = inlined_call_operand.vmem [shape: f32[2,4,256], index: 1, kind: input, shape index: {}]
  %s2 = inlined_call_operand.vmem [shape: u8[2,1,256], index: 2, kind: input, shape index: {}]
  %s3 = inlined_call_operand.vmem [shape: f32[2,1,1,1], index: 3, kind: output, shape index: {0}]
  %s4 = inlined_call_operand.vmem [shape: f32[2,1,1,1], index: 4, kind: output, shape index: {1}]
  %s5 = inlined_call_operand.vmem [shape: f32[2,1,1,1], index: 5, kind: output, shape index: {2}]
  %6 = xla_tuple %s3, %s4, %s5
  %s7 = sld [smem:[#allocation0]]
  $region61: #{cross_entropy2d.1} parent=0
    _
  %s9 = ssub.s32 1, %s7
  %s10 = scalar_select 0, %s9, %s7
  loop: start=0, step=1, limit=4
  $region2: #{cross_entropy2d.1} parent=0 // loop_pre_header
    _
  $region3: #{cross_entropy2d.1} parent=0 // loop_header
    %s12 = sphi 0, %s16
    %p13 = scmp.ge.s32.totalorder %s12, 4
    %s19 = sphi 0, %s31
    %s20 = sphi 0, %s27
    %s21 = sphi 0, %s19
    %s22 = sphi 0, %s20
    %s23 = sphi 0, %s21
    %s24 = sphi 0, %s22
    %s36 = sphi 0, %s38
    %s39 = sphi 0, %s36
    %s40 = sphi 0, %s39
    %s56 = sphi 0, %s40
    %s64 = sphi 0, %s66
    %s67 = sphi 0, %s64
    %s68 = sphi 0, %s67
    %s84 = sphi 0, %s68
    %s92 = sphi 0, %s94
    %s95 = sphi 0, %s92
    %s96 = sphi 0, %s95
    %s112 = sphi 0, %s96
    %s120 = sphi 0, %s122
    %s123 = sphi 0, %s120
    %s124 = sphi 0, %s123
    %s140 = sphi 0, %s124
    %s148 = sphi 0, %s150
    %s151 = sphi 0, %s148
    %s152 = sphi 0, %s151
    %s168 = sphi 0, %s152
    %s176 = sphi 0, %s178
    %s179 = sphi 0, %s176
    %s180 = sphi 0, %s179
    %s196 = sphi 0, %s180
  $region4: #{cross_entropy2d.1} parent=0 // loop_header_branch
    %15 = sbr.rel (%p13) target = $region8
  $region5: #{cross_entropy2d.1} parent=0 // loop_body
    %s17 = ssub.s32 %s12, 1
    %s18 = ssub.s32 %s12, 2
    %s25 = sadd.s32 1, %s20
    %p26 = scmp.ge.s32.totalorder %s25, 1
    %s27 = scalar_select %p26, 0, %s25
    %s28 = sadd.s32 1, %s19
    %s29 = scalar_select %p26, %s28, %s19
    %p30 = scmp.ge.s32.totalorder %s29, 2
    %s31 = scalar_select %p30, 0, %s29
    %s32 = ssub.s32 %s19, %s31
    %s33 = ssub.s32 %s20, %s27
    %s34 = sor.u32 %s32, %s33
    %p35 = scmp.eq.s32.totalorder %s34, 0
    %s37 = sadd.s32 %s36, 1
    %s38 = scalar_select %p35, %s36, %s37
    %p41 = pneg %p35
    %p42 = scmp.eq.s32.totalorder %s12, 1
    %p43 = por %p41, %p42
    %p44 = scmp.ne.s32.totalorder %s36, %s39
    %p45 = scmp.eq.s32.totalorder %s12, 0
    %p46 = por %p44, %p45
    %p47 = scmp.ne.s32.totalorder %s36, %s39
    %p48 = scmp.eq.s32.totalorder %s17, 1
    %p49 = por %p47, %p48
    %p50 = scmp.ne.s32.totalorder %s39, %s40
    %p51 = scmp.eq.s32.totalorder %s17, 0
    %p52 = por %p50, %p51
    %p53 = scmp.ne.s32.totalorder %s39, %s40
    %p54 = scmp.eq.s32.totalorder %s18, 1
    %p55 = por %p53, %p54
    %p57 = scmp.ne.s32.totalorder %s40, %s56
    %p58 = scmp.eq.s32.totalorder %s18, 0
    %p59 = por %p57, %p58
    %s60 = ssub.s32 %s19, %s31
    %s61 = ssub.s32 %s20, %s27
    %s62 = sor.u32 %s60, %s61
    %p63 = scmp.eq.s32.totalorder %s62, 0
    %s65 = sadd.s32 %s64, 1
    %s66 = scalar_select %p63, %s64, %s65
    %p69 = pneg %p63
    %p70 = scmp.eq.s32.totalorder %s12, 1
    %p71 = por %p69, %p70
    %p72 = scmp.ne.s32.totalorder %s64, %s67
    %p73 = scmp.eq.s32.totalorder %s12, 0
    %p74 = por %p72, %p73
    %p75 = scmp.ne.s32.totalorder %s64, %s67
    %p76 = scmp.eq.s32.totalorder %s17, 1
    %p77 = por %p75, %p76
    %p78 = scmp.ne.s32.totalorder %s67, %s68
    %p79 = scmp.eq.s32.totalorder %s17, 0
    %p80 = por %p78, %p79
    %p81 = scmp.ne.s32.totalorder %s67, %s68
    %p82 = scmp.eq.s32.totalorder %s18, 1
    %p83 = por %p81, %p82
    %p85 = scmp.ne.s32.totalorder %s68, %s84
    %p86 = scmp.eq.s32.totalorder %s18, 0
    %p87 = por %p85, %p86
    %s88 = ssub.s32 %s19, %s31
    %s89 = ssub.s32 %s20, %s27
    %s90 = sor.u32 %s88, %s89
    %p91 = scmp.eq.s32.totalorder %s90, 0
    %s93 = sadd.s32 %s92, 1
    %s94 = scalar_select %p91, %s92, %s93
    %p97 = pneg %p91
    %p98 = scmp.eq.s32.totalorder %s12, 1
    %p99 = por %p97, %p98
    %p100 = scmp.ne.s32.totalorder %s92, %s95
    %p101 = scmp.eq.s32.totalorder %s12, 0
    %p102 = por %p100, %p101
    %p103 = scmp.ne.s32.totalorder %s92, %s95
    %p104 = scmp.eq.s32.totalorder %s17, 1
    %p105 = por %p103, %p104
    %p106 = scmp.ne.s32.totalorder %s95, %s96
    %p107 = scmp.eq.s32.totalorder %s17, 0
    %p108 = por %p106, %p107
    %p109 = scmp.ne.s32.totalorder %s95, %s96
    %p110 = scmp.eq.s32.totalorder %s18, 1
    %p111 = por %p109, %p110
    %p113 = scmp.ne.s32.totalorder %s96, %s112
    %p114 = scmp.eq.s32.totalorder %s18, 0
    %p115 = por %p113, %p114
    %s116 = ssub.s32 %s19, %s31
    %s117 = ssub.s32 %s20, %s27
    %s118 = sor.u32 %s116, %s117
    %p119 = scmp.eq.s32.totalorder %s118, 0
    %s121 = sadd.s32 %s120, 1
    %s122 = scalar_select %p119, %s120, %s121
    %p125 = pneg %p119
    %p126 = scmp.eq.s32.totalorder %s12, 1
    %p127 = por %p125, %p126
    %p128 = scmp.ne.s32.totalorder %s120, %s123
    %p129 = scmp.eq.s32.totalorder %s12, 0
    %p130 = por %p128, %p129
    %p131 = scmp.ne.s32.totalorder %s120, %s123
    %p132 = scmp.eq.s32.totalorder %s17, 1
    %p133 = por %p131, %p132
    %p134 = scmp.ne.s32.totalorder %s123, %s124
    %p135 = scmp.eq.s32.totalorder %s17, 0
    %p136 = por %p134, %p135
    %p137 = scmp.ne.s32.totalorder %s123, %s124
    %p138 = scmp.eq.s32.totalorder %s18, 1
    %p139 = por %p137, %p138
    %p141 = scmp.ne.s32.totalorder %s124, %s140
    %p142 = scmp.eq.s32.totalorder %s18, 0
    %p143 = por %p141, %p142
    %s144 = ssub.s32 %s19, %s31
    %s145 = ssub.s32 %s20, %s27
    %s146 = sor.u32 %s144, %s145
    %p147 = scmp.eq.s32.totalorder %s146, 0
    %s149 = sadd.s32 %s148, 1
    %s150 = scalar_select %p147, %s148, %s149
    %p153 = pneg %p147
    %p154 = scmp.eq.s32.totalorder %s12, 1
    %p155 = por %p153, %p154
    %p156 = scmp.ne.s32.totalorder %s148, %s151
    %p157 = scmp.eq.s32.totalorder %s12, 0
    %p158 = por %p156, %p157
    %p159 = scmp.ne.s32.totalorder %s148, %s151
    %p160 = scmp.eq.s32.totalorder %s17, 1
    %p161 = por %p159, %p160
    %p162 = scmp.ne.s32.totalorder %s151, %s152
    %p163 = scmp.eq.s32.totalorder %s17, 0
    %p164 = por %p162, %p163
    %p165 = scmp.ne.s32.totalorder %s151, %s152
    %p166 = scmp.eq.s32.totalorder %s18, 1
    %p167 = por %p165, %p166
    %p169 = scmp.ne.s32.totalorder %s152, %s168
    %p170 = scmp.eq.s32.totalorder %s18, 0
    %p171 = por %p169, %p170
    %s172 = ssub.s32 %s19, %s31
    %s173 = ssub.s32 %s20, %s27
    %s174 = sor.u32 %s172, %s173
    %p175 = scmp.eq.s32.totalorder %s174, 0
    %s177 = sadd.s32 %s176, 1
    %s178 = scalar_select %p175, %s176, %s177
    %p181 = pneg %p175
    %p182 = scmp.eq.s32.totalorder %s12, 1
    %p183 = por %p181, %p182
    %p184 = scmp.ne.s32.totalorder %s176, %s179
    %p185 = scmp.eq.s32.totalorder %s12, 0
    %p186 = por %p184, %p185
    %p187 = scmp.ne.s32.totalorder %s176, %s179
    %p188 = scmp.eq.s32.totalorder %s17, 1
    %p189 = por %p187, %p188
    %p190 = scmp.ne.s32.totalorder %s179, %s180
    %p191 = scmp.eq.s32.totalorder %s17, 0
    %p192 = por %p190, %p191
    %p193 = scmp.ne.s32.totalorder %s179, %s180
    %p194 = scmp.eq.s32.totalorder %s18, 1
    %p195 = por %p193, %p194
    %p197 = scmp.ne.s32.totalorder %s180, %s196
    %p198 = scmp.eq.s32.totalorder %s18, 0
    %p199 = por %p197, %p198
    %p200 = scmp.le.s32.totalorder 1, %s12
    %p201 = scmp.lt.s32.totalorder %s12, 3
    %p202 = pnand %p200, %p201
    %p203 = pneg %p202
    // Predicated region
    $region9: #{cross_entropy2d.1} parent=5 // pred_check
      _
    $region10: #{cross_entropy2d.1} parent=5 // pred_check_branch
      %205 = sbr.rel (%p202) target = $region12
    $region11: #{cross_entropy2d.1} parent=5 // pred_region
      %s206 = ssub.s32 %s12, 1
    $region12: #{cross_entropy2d.1} parent=5 // pred_fallthru
      _
    %p207 = scmp.lt.s32.totalorder %s12, 2
    // Predicated region
    $region13: #{cross_entropy2d.1} parent=5 // pred_check
      %p208 = pneg %p207
    $region14: #{cross_entropy2d.1} parent=5 // pred_check_branch
      %210 = sbr.rel (%p208) target = $region16
    $region15: #{cross_entropy2d.1} parent=5 // pred_region
      // Predicated region
      $region17: #{cross_entropy2d.1} parent=15 // pred_check
        %p211 = pneg %p46
      $region18: #{cross_entropy2d.1} parent=15 // pred_check_branch
        %213 = sbr.rel (%p211) target = $region20
      $region19: #{cross_entropy2d.1} parent=15 // pred_region
        %s214 = smul.u32 2, %s20
        %p215 = scmp.lt.s32.totalorder %s19, 1
        %s216 = scalar_select %p215, %s19, 1
        %p217 = scmp.lt.s32.totalorder %s214, 1
        %s218 = scalar_select %p217, %s214, 1
        %s219 = smul.addr %s216, 2
        %s220 = sadd.s32 %s218, %s219
        %s221 = smul.addr %s220, 4
        %s222 = scalar_lea.vmem %s0, %s221
        %s223 = smul.u32 2, %s20
      $region20: #{cross_entropy2d.1} parent=15 // pred_fallthru
        _
      // Predicated region
      $region21: #{cross_entropy2d.1} parent=15 // pred_check
        %p224 = pneg %p74
      $region22: #{cross_entropy2d.1} parent=15 // pred_check_branch
        %226 = sbr.rel (%p224) target = $region24
      $region23: #{cross_entropy2d.1} parent=15 // pred_region
        %s227 = smul.u32 2, %s20
        %p228 = scmp.lt.s32.totalorder %s19, 1
        %s229 = scalar_select %p228, %s19, 1
        %p230 = scmp.lt.s32.totalorder %s227, 1
        %s231 = scalar_select %p230, %s227, 1
        %s232 = smul.addr %s229, 2
        %s233 = sadd.s32 %s231, %s232
        %s234 = smul.addr %s233, 4
        %s235 = scalar_lea.vmem %s1, %s234
        %s236 = smul.u32 2, %s20
      $region24: #{cross_entropy2d.1} parent=15 // pred_fallthru
        _
      // Predicated region
      $region25: #{cross_entropy2d.1} parent=15 // pred_check
        %p237 = pneg %p102
      $region26: #{cross_entropy2d.1} parent=15 // pred_check_branch
        %239 = sbr.rel (%p237) target = $region28
      $region27: #{cross_entropy2d.1} parent=15 // pred_region
        %s240 = smul.u32 2, %s20
        %p241 = scmp.lt.s32.totalorder %s19, 1
        %s242 = scalar_select %p241, %s19, 1
        %p243 = scmp.lt.s32.totalorder %s240, 1
        %s244 = scalar_select %p243, %s240, 1
        %s245 = smul.addr %s242, 2
        %s246 = sadd.s32 %s244, %s245
        %s247 = scalar_lea.vmem %s2, %s246
        %s248 = smul.u32 2, %s20
      $region28: #{cross_entropy2d.1} parent=15 // pred_fallthru
        _
    $region16: #{cross_entropy2d.1} parent=5 // pred_fallthru
      _
    %p249 = scmp.le.s32.totalorder 1, %s12
    %p250 = scmp.lt.s32.totalorder %s12, 3
    %p251 = pnand %p249, %p250
    %p252 = pneg %p251
    // Predicated region
    $region29: #{cross_entropy2d.1} parent=5 // pred_check
      _
    $region30: #{cross_entropy2d.1} parent=5 // pred_check_branch
      %254 = sbr.rel (%p251) target = $region32
    $region31: #{cross_entropy2d.1} parent=5 // pred_region
      %s255 = ssub.s32 %s12, 1
      %s256 = smul.u32 2, %s22
      %p257 = scmp.lt.s32.totalorder %s21, 1
      %s258 = scalar_select %p257, %s21, 1
      %p259 = scmp.lt.s32.totalorder %s256, 1
      %s260 = scalar_select %p259, %s256, 1
      %s261 = smul.addr %s258, 2
      %s262 = sadd.s32 %s260, %s261
      %s263 = smul.addr %s262, 4
      %s264 = scalar_lea.vmem %s0, %s263
      %p265 = pneg %p52
      %p266 = pneg %p49
      %s267 = smul.u32 2, %s22
      %p268 = scmp.lt.s32.totalorder %s21, 1
      %s269 = scalar_select %p268, %s21, 1
      %p270 = scmp.lt.s32.totalorder %s267, 1
      %s271 = scalar_select %p270, %s267, 1
      %s272 = smul.addr %s269, 2
      %s273 = sadd.s32 %s271, %s272
      %s274 = smul.addr %s273, 4
      %s275 = scalar_lea.vmem %s1, %s274
      %p276 = pneg %p80
      %p277 = pneg %p77
      %s278 = smul.u32 2, %s22
      %p279 = scmp.lt.s32.totalorder %s21, 1
      %s280 = scalar_select %p279, %s21, 1
      %p281 = scmp.lt.s32.totalorder %s278, 1
      %s282 = scalar_select %p281, %s278, 1
      %s283 = smul.addr %s280, 2
      %s284 = sadd.s32 %s282, %s283
      %s285 = scalar_lea.vmem %s2, %s284
      %p286 = pneg %p108
      %p287 = pneg %p105
      %p288 = pneg %p136
      %p289 = pneg %p133
      %p290 = scmp.lt.s32.totalorder %s21, 1
      %s291 = scalar_select %p290, %s21, 1
      %p292 = scmp.lt.s32.totalorder %s22, 0
      %s293 = scalar_select %p292, %s22, 0
      %s294 = sadd.s32 %s293, %s291
      %s295 = scalar_lea.vmem %s3, %s294
      %p296 = pneg %p164
      %p297 = pneg %p161
      %p298 = scmp.lt.s32.totalorder %s21, 1
      %s299 = scalar_select %p298, %s21, 1
      %p300 = scmp.lt.s32.totalorder %s22, 0
      %s301 = scalar_select %p300, %s22, 0
      %s302 = sadd.s32 %s301, %s299
      %s303 = scalar_lea.vmem %s4, %s302
      %p304 = pneg %p192
      %p305 = pneg %p189
      %p306 = scmp.lt.s32.totalorder %s21, 1
      %s307 = scalar_select %p306, %s21, 1
      %p308 = scmp.lt.s32.totalorder %s22, 0
      %s309 = scalar_select %p308, %s22, 0
      %s310 = sadd.s32 %s309, %s307
      %s311 = scalar_lea.vmem %s5, %s310
      %s312 = smul.u32 2, %s22
      %p313 = scmp.lt.s32.totalorder %s21, 1
      %s314 = scalar_select %p313, %s21, 1
      %p315 = scmp.lt.s32.totalorder %s312, 1
      %s316 = scalar_select %p315, %s312, 1
      %s317 = smul.addr %s314, 2
      %s318 = sadd.s32 %s316, %s317
      %s319 = smul.addr %s318, 4
      %s320 = scalar_lea.vmem %s0, %s319
      %s321 = smul.u32 2, %s22
      %s322 = smul.u32 2, %s22
      %p323 = scmp.lt.s32.totalorder %s21, 1
      %s324 = scalar_select %p323, %s21, 1
      %p325 = scmp.lt.s32.totalorder %s322, 1
      %s326 = scalar_select %p325, %s322, 1
      %s327 = smul.addr %s324, 2
      %s328 = sadd.s32 %s326, %s327
      %s329 = smul.addr %s328, 4
      %s330 = scalar_lea.vmem %s1, %s329
      %s331 = smul.u32 2, %s22
      %s332 = smul.u32 2, %s22
      %p333 = scmp.lt.s32.totalorder %s21, 1
      %s334 = scalar_select %p333, %s21, 1
      %p335 = scmp.lt.s32.totalorder %s332, 1
      %s336 = scalar_select %p335, %s332, 1
      %s337 = smul.addr %s334, 2
      %s338 = sadd.s32 %s336, %s337
      %s339 = scalar_lea.vmem %s2, %s338
      %s340 = smul.u32 2, %s22
      %p341 = scmp.lt.s32.totalorder %s21, 1
      %s342 = scalar_select %p341, %s21, 1
      %p343 = scmp.lt.s32.totalorder %s22, 0
      %s344 = scalar_select %p343, %s22, 0
      %s345 = sadd.s32 %s344, %s342
      %s346 = scalar_lea.vmem %s3, %s345
      %p347 = scmp.lt.s32.totalorder %s21, 1
      %s348 = scalar_select %p347, %s21, 1
      %p349 = scmp.lt.s32.totalorder %s22, 0
      %s350 = scalar_select %p349, %s22, 0
      %s351 = sadd.s32 %s350, %s348
      %s352 = scalar_lea.vmem %s4, %s351
      %p353 = scmp.lt.s32.totalorder %s21, 1
      %s354 = scalar_select %p353, %s21, 1
      %p355 = scmp.lt.s32.totalorder %s22, 0
      %s356 = scalar_select %p355, %s22, 0
      %s357 = sadd.s32 %s356, %s354
      %s358 = scalar_lea.vmem %s5, %s357
      %v359 = vld [vmem:[%s339] sm:$0x3]
      %v360 = vunpack.c.0.s8 %v359
      %v361 = vand.u32 %v360, 255
      %vm362 = vcmp.ne.s32.totalorder %v361, 255
      %v363 = vsel %vm362, 1, 0
      %v364 = vcvt.s32.f32 %v363
      %v366 = vperm.slane %v364, 0
      %v367 = vperm.slane %v364, 4
      %vm370 = vcmask 1040384
      %v371 = vsel %vm370, %v366, 0.0
      %v372 = vsel %vm370, %v367, 0.0
      %v373 = vadd.f32 %v371, %v372
      %374 = vadd.xlane.f32.xlu0 %v373
      %v375 = vpop.xlane.xlu0 %374
      %v376 = vrot.slane %v375, 4
      %v377 = vadd.f32 %v375, %v376
      %v378 = vrot.slane %v377, 2
      %v379 = vadd.f32 %v377, %v378
      %v380 = vrot.slane %v379, 1
      %v381 = vadd.f32 %v379, %v380
      %s382 = vtos %v381
      %v383 = vstv %s382
      %vm384 = vcmask 0
      %385 = vst.msk [vmem:[%s358] sm:$0x1] %vm384, %v383
      %v386 = vld [vmem:[%s320] ss:$4 sm:$0x3]
      %s387 = scalar_lea.vmem %s320, 1
      %v388 = vld [vmem:[%s387] ss:$4 sm:$0x3]
      %v389 = vmax.f32 %v386, %v388
      %s390 = scalar_lea.vmem %s320, 2
      %v391 = vld [vmem:[%s390] ss:$4 sm:$0x3]
      %v392 = vmax.f32 %v389, %v391
      %s393 = scalar_lea.vmem %s320, 3
      %v394 = vld [vmem:[%s393] ss:$4 sm:$0x3]
      %v395 = vmax.f32 %v392, %v394
      %v396 = vsub.f32 %v386, %v395
      %v397 = vmul.f32 %v396, 1.442695
      %v398 = vpow.pop %v397
      %v399 = vadd.f32 %v398, 0.0
      %vm400 = vcmp.eq.s32.totalorder %v361, 0
      %v403 = vunpack.c.l.s4 286326784
      %v404 = vunpack.c.0.s8 %v403
      %v405 = vperm.slane %v386, %v404
      %v407 = vsel %vm400, %v405, 0.0
      %v408 = vsub.f32 %v388, %v395
      %v409 = vmul.f32 %v408, 1.442695
      %v410 = vpow.pop %v409
      %v411 = vadd.f32 %v399, %v410
      %vm412 = vcmp.eq.s32.totalorder %v361, 1
      %v415 = vunpack.c.l.s4 286326784
      %v416 = vunpack.c.0.s8 %v415
      %v417 = vperm.slane %v388, %v416
      %v419 = vsel %vm412, %v417, %v407
      %v420 = vsub.f32 %v391, %v395
      %v421 = vmul.f32 %v420, 1.442695
      %v422 = vpow.pop %v421
      %v423 = vadd.f32 %v411, %v422
      %vm424 = vcmp.eq.s32.totalorder %v361, 2
      %v427 = vunpack.c.l.s4 286326784
      %v428 = vunpack.c.0.s8 %v427
      %v429 = vperm.slane %v391, %v428
      %v431 = vsel %vm424, %v429, %v419
      %v432 = vsub.f32 %v394, %v395
      %v433 = vmul.f32 %v432, 1.442695
      %v434 = vpow.pop %v433
      %v435 = vadd.f32 %v423, %v434
      %vm436 = vcmp.eq.s32.totalorder %v361, 3
      %v439 = vunpack.c.l.s4 286326784
      %v440 = vunpack.c.0.s8 %v439
      %v441 = vperm.slane %v394, %v440
      %v443 = vsel %vm436, %v441, %v431
      %v444 = vlog2.pop %v435
      %v445 = vmul.f32 %v444, 0.6931472
      %v446 = vadd.f32 %v395, %v445
      %v448 = vrot.slane %v443, 3
      %v449 = vsel %vm370, %v443, %v448
      %v451 = vsub.f32 %v446, %v449
      %v454 = vunpack.c.l.s4 286326784
      %v455 = vunpack.c.0.s8 %v454
      %v456 = vperm.slane %v451, %v455
      %v458 = vsel %vm362, %v456, 0.0
      %v460 = vperm.slane %v458, 0
      %v461 = vperm.slane %v458, 4
      %v464 = vsel %vm370, %v460, 0.0
      %v465 = vsel %vm370, %v461, 0.0
      %v466 = vadd.f32 %v464, %v465
      %467 = vadd.xlane.f32.xlu0 %v466
      %v468 = vpop.xlane.xlu0 %467
      %v469 = vrot.slane %v468, 4
      %v470 = vadd.f32 %v468, %v469
      %v471 = vrot.slane %v470, 2
      %v472 = vadd.f32 %v470, %v471
      %v473 = vrot.slane %v472, 1
      %v474 = vadd.f32 %v472, %v473
      %s475 = vtos %v474
      %v476 = vstv %s475
      %477 = vst.msk [vmem:[%s346] sm:$0x1] %vm384, %v476
      %v478 = vld [vmem:[%s330] ss:$4 sm:$0x3]
      %s479 = scalar_lea.vmem %s330, 1
      %v480 = vld [vmem:[%s479] ss:$4 sm:$0x3]
      %v481 = vmax.f32 %v478, %v480
      %s482 = scalar_lea.vmem %s330, 2
      %v483 = vld [vmem:[%s482] ss:$4 sm:$0x3]
      %v484 = vmax.f32 %v481, %v483
      %s485 = scalar_lea.vmem %s330, 3
      %v486 = vld [vmem:[%s485] ss:$4 sm:$0x3]
      %v487 = vmax.f32 %v484, %v486
      %v488 = vsub.f32 %v478, %v487
      %v489 = vmul.f32 %v488, 1.442695
      %v490 = vpow.pop %v489
      %v491 = vadd.f32 %v490, 0.0
      %v494 = vunpack.c.l.s4 286326784
      %v495 = vunpack.c.0.s8 %v494
      %v496 = vperm.slane %v478, %v495
      %v498 = vsel %vm400, %v496, 0.0
      %v499 = vsub.f32 %v480, %v487
      %v500 = vmul.f32 %v499, 1.442695
      %v501 = vpow.pop %v500
      %v502 = vadd.f32 %v491, %v501
      %v505 = vunpack.c.l.s4 286326784
      %v506 = vunpack.c.0.s8 %v505
      %v507 = vperm.slane %v480, %v506
      %v509 = vsel %vm412, %v507, %v498
      %v510 = vsub.f32 %v483, %v487
      %v511 = vmul.f32 %v510, 1.442695
      %v512 = vpow.pop %v511
      %v513 = vadd.f32 %v502, %v512
      %v516 = vunpack.c.l.s4 286326784
      %v517 = vunpack.c.0.s8 %v516
      %v518 = vperm.slane %v483, %v517
      %v520 = vsel %vm424, %v518, %v509
      %v521 = vsub.f32 %v486, %v487
      %v522 = vmul.f32 %v521, 1.442695
      %v523 = vpow.pop %v522
      %v524 = vadd.f32 %v513, %v523
      %v527 = vunpack.c.l.s4 286326784
      %v528 = vunpack.c.0.s8 %v527
      %v529 = vperm.slane %v486, %v528
      %v531 = vsel %vm436, %v529, %v520
      %v532 = vlog2.pop %v524
      %v533 = vmul.f32 %v532, 0.6931472
      %v534 = vadd.f32 %v487, %v533
      %v536 = vrot.slane %v531, 3
      %v537 = vsel %vm370, %v531, %v536
      %v539 = vsub.f32 %v534, %v537
      %v542 = vunpack.c.l.s4 286326784
      %v543 = vunpack.c.0.s8 %v542
      %v544 = vperm.slane %v539, %v543
      %v546 = vsel %vm362, %v544, 0.0
      %v548 = vperm.slane %v546, 0
      %v549 = vperm.slane %v546, 4
      %v552 = vsel %vm370, %v548, 0.0
      %v553 = vsel %vm370, %v549, 0.0
      %v554 = vadd.f32 %v552, %v553
      %555 = vadd.xlane.f32.xlu0 %v554
      %v556 = vpop.xlane.xlu0 %555
      %v557 = vrot.slane %v556, 4
      %v558 = vadd.f32 %v556, %v557
      %v559 = vrot.slane %v558, 2
      %v560 = vadd.f32 %v558, %v559
      %v561 = vrot.slane %v560, 1
      %v562 = vadd.f32 %v560, %v561
      %s563 = vtos %v562
      %v564 = vstv %s563
      %565 = vst.msk [vmem:[%s352] sm:$0x1] %vm384, %v564
      %p566 = scmp.lt.s32.totalorder %s21, 1
      %s567 = scalar_select %p566, %s21, 1
      %p568 = scmp.lt.s32.totalorder %s22, 0
      %s569 = scalar_select %p568, %s22, 0
      %s570 = sadd.s32 %s569, %s567
      %s571 = scalar_lea.vmem %s3, %s570
      %p572 = scmp.lt.s32.totalorder %s21, 1
      %s573 = scalar_select %p572, %s21, 1
      %p574 = scmp.lt.s32.totalorder %s22, 0
      %s575 = scalar_select %p574, %s22, 0
      %s576 = sadd.s32 %s575, %s573
      %s577 = scalar_lea.vmem %s4, %s576
      %p578 = scmp.lt.s32.totalorder %s21, 1
      %s579 = scalar_select %p578, %s21, 1
      %p580 = scmp.lt.s32.totalorder %s22, 0
      %s581 = scalar_select %p580, %s22, 0
      %s582 = sadd.s32 %s581, %s579
      %s583 = scalar_lea.vmem %s5, %s582
      // Predicated region
      $region33: #{cross_entropy2d.1} parent=31 // pred_check
        %p584 = pneg %p133
      $region34: #{cross_entropy2d.1} parent=31 // pred_check_branch
        %586 = sbr.rel (%p584) target = $region36
      $region35: #{cross_entropy2d.1} parent=31 // pred_region
        _
      $region36: #{cross_entropy2d.1} parent=31 // pred_fallthru
        _
      // Predicated region
      $region37: #{cross_entropy2d.1} parent=31 // pred_check
        %p587 = pneg %p161
      $region38: #{cross_entropy2d.1} parent=31 // pred_check_branch
        %589 = sbr.rel (%p587) target = $region40
      $region39: #{cross_entropy2d.1} parent=31 // pred_region
        _
      $region40: #{cross_entropy2d.1} parent=31 // pred_fallthru
        _
      // Predicated region
      $region41: #{cross_entropy2d.1} parent=31 // pred_check
        %p590 = pneg %p189
      $region42: #{cross_entropy2d.1} parent=31 // pred_check_branch
        %592 = sbr.rel (%p590) target = $region44
      $region43: #{cross_entropy2d.1} parent=31 // pred_region
        _
      $region44: #{cross_entropy2d.1} parent=31 // pred_fallthru
        _
    $region32: #{cross_entropy2d.1} parent=5 // pred_fallthru
      _
    %p593 = scmp.le.s32.totalorder 2, %s12
    // Predicated region
    $region45: #{cross_entropy2d.1} parent=5 // pred_check
      %p594 = pneg %p593
    $region46: #{cross_entropy2d.1} parent=5 // pred_check_branch
      %596 = sbr.rel (%p594) target = $region48
    $region47: #{cross_entropy2d.1} parent=5 // pred_region
      %s597 = ssub.s32 %s12, 2
      // Predicated region
      $region49: #{cross_entropy2d.1} parent=47 // pred_check
        %p598 = pneg %p139
      $region50: #{cross_entropy2d.1} parent=47 // pred_check_branch
        %600 = sbr.rel (%p598) target = $region52
      $region51: #{cross_entropy2d.1} parent=47 // pred_region
        %p601 = scmp.lt.s32.totalorder %s23, 1
        %s602 = scalar_select %p601, %s23, 1
        %p603 = scmp.lt.s32.totalorder %s24, 0
        %s604 = scalar_select %p603, %s24, 0
        %s605 = sadd.s32 %s604, %s602
        %s606 = scalar_lea.vmem %s3, %s605
      $region52: #{cross_entropy2d.1} parent=47 // pred_fallthru
        _
      // Predicated region
      $region53: #{cross_entropy2d.1} parent=47 // pred_check
        %p607 = pneg %p167
      $region54: #{cross_entropy2d.1} parent=47 // pred_check_branch
        %609 = sbr.rel (%p607) target = $region56
      $region55: #{cross_entropy2d.1} parent=47 // pred_region
        %p610 = scmp.lt.s32.totalorder %s23, 1
        %s611 = scalar_select %p610, %s23, 1
        %p612 = scmp.lt.s32.totalorder %s24, 0
        %s613 = scalar_select %p612, %s24, 0
        %s614 = sadd.s32 %s613, %s611
        %s615 = scalar_lea.vmem %s4, %s614
      $region56: #{cross_entropy2d.1} parent=47 // pred_fallthru
        _
      // Predicated region
      $region57: #{cross_entropy2d.1} parent=47 // pred_check
        %p616 = pneg %p195
      $region58: #{cross_entropy2d.1} parent=47 // pred_check_branch
        %618 = sbr.rel (%p616) target = $region60
      $region59: #{cross_entropy2d.1} parent=47 // pred_region
        %p619 = scmp.lt.s32.totalorder %s23, 1
        %s620 = scalar_select %p619, %s23, 1
        %p621 = scmp.lt.s32.totalorder %s24, 0
        %s622 = scalar_select %p621, %s24, 0
        %s623 = sadd.s32 %s622, %s620
        %s624 = scalar_lea.vmem %s5, %s623
      $region60: #{cross_entropy2d.1} parent=47 // pred_fallthru
        _
    $region48: #{cross_entropy2d.1} parent=5 // pred_fallthru
      _
  $region6: #{cross_entropy2d.1} parent=0 // loop_footer
    %s16 = sadd.s32 1, %s12
  $region7: #{cross_entropy2d.1} parent=0 // loop_footer_branch
    %11 = sbr.rel target = $region3
  $region8: #{cross_entropy2d.1} parent=0 // loop_exit
    _

</llo_original>
